<compile_context>
chip_gen: v7x
topology: tpu7x:2x2x1
jax: 0.10.0
libtpu: 0.0.40
codegen_flags: <defaults>
</compile_context>

<pallas_src>
import jax
import jax.numpy as jnp
from jax.experimental import pallas as pl
from jax.experimental.pallas import tpu as pltpu

NUM_TARGET = 3  # target_position_indices = slice(-3, None)


def _delta_act_kernel(x_ref, theta_ref, w_ref, b_ref, y_ref, o_ref):
    # x_ref:     (tb, H)   f32 tail-mean of the inputs for this batch tile
    # theta_ref: (1, H)    f32 bias added to the input
    # w_ref:     (H, td)   sliced_model weight tile (bf16 or f32)
    # b_ref:     (1, td)   f32 sliced_model bias tile
    # y_ref:     (tb, td)  f32 tail-mean of the reference activations
    # o_ref:     (tb, td)  f32 mean delta over the last T positions
    lhs = (x_ref[...] + theta_ref[...]).astype(w_ref.dtype)
    z = jnp.dot(lhs, w_ref[...], preferred_element_type=jnp.float32)   # MXU
    o_ref[...] = (z + b_ref[...] - y_ref[...]).astype(o_ref.dtype)


def _round_up(v, m):
    return ((v + m - 1) // m) * m


def _vmem_capacity_bytes():
    """Best-effort physical VMEM query; conservative (v7x per-TC) fallback."""
    try:
        info = pltpu.get_tpu_info()
        cap = getattr(info, "vmem_capacity_bytes", None)
        if cap:
            return int(cap)
    except Exception:
        pass
    return 64 << 20


def _resident_bytes(H, tb, td, w_itemsize):
    io = 4  # f32 means / theta / bias / out
    per_step = (H * td * w_itemsize      # W tile
                + tb * H * io            # x_mean tile
                + tb * td * io           # y_mean tile
                + tb * td * 4            # out tile
                + H * io                 # theta
                + td * io)               # bias
    return 2 * per_step                  # double-buffered pipeline


def _select_td(H, D, tb, w_itemsize, budget):
    """Largest lane-dense output-feature tile that fits the VMEM budget."""
    if _resident_bytes(H, tb, D, w_itemsize) <= budget:
        return D                          # whole D fits (also covers D < 128)
    if D < 256:
        return D if D < 128 else 128
    td = (D // 256) * 256
    while td > 256 and _resident_bytes(H, tb, td, w_itemsize) > budget:
        td -= 256
    if _resident_bytes(H, tb, td, w_itemsize) > budget:
        td = 128  # smallest lane-dense tile; see TODO(synk) above for K tiling
    return td


def delta_activations(theta, x, y, w, bias, *, num_target=NUM_TARGET,
                      block_b=256, weight_dtype=jnp.bfloat16):
    """theta: (H,), x: (B,S,H), y: (B,S,D), w: (H,D), bias: (D,) -> (B,D) f32."""
    B, S, H = x.shape
    D = w.shape[1]
    assert S >= num_target, "sequence shorter than target window"

    # Hoisted linear tail-mean (XLA fuses slice + reduce). Keeping the means in
    # f32 keeps the subtraction / bias add exact; only the matmul LHS is cast.
    x_mean = jnp.mean(x[:, S - num_target:, :].astype(jnp.float32), axis=1)  # (B,H)
    y_mean = jnp.mean(y[:, S - num_target:, :].astype(jnp.float32), axis=1)  # (B,D)

    theta2 = theta.reshape(1, H).astype(jnp.float32)
    bias2 = bias.reshape(1, D).astype(jnp.float32)
    w_s = w if weight_dtype is None else w.astype(weight_dtype)
    w_itemsize = jnp.dtype(w_s.dtype).itemsize

    # --- tile selection -----------------------------------------------------
    vmem_cap = _vmem_capacity_bytes()
    budget = int(vmem_cap * 0.70)

    # Batch tile: multiple of 8 (sublane) when tiling, else full B.
    tb = block_b if B > block_b else B

    # Output-feature tile: VMEM-budgeted, lane-dense; cdiv grid handles ragged D.
    td = _select_td(H, D, tb, w_itemsize, budget)

    n_d = pl.cdiv(D, td)
    n_b = pl.cdiv(B, tb)

    # v7x has 2 TensorCores sharded over "parallel" axes: make sure small
    # problems still produce >= 2 grid steps when cheap to do so.
    if n_d == 1 and n_b == 1 and B >= 16:
        tb = _round_up(pl.cdiv(B, 2), 8)
        n_b = pl.cdiv(B, tb)

    resident = _resident_bytes(H, tb, td, w_itemsize)
    vmem_limit = max(32 << 20,
                     resident + (4 << 20),
                     min(int(vmem_cap * 0.90), resident + (16 << 20)))

    # Grid: D tiles OUTER, batch tiles INNER -> the W block index is constant
    # over the inner axis, so each W tile is streamed from HBM exactly once.
    out = pl.pallas_call(
        _delta_act_kernel,
        out_shape=jax.ShapeDtypeStruct((B, D), jnp.float32),
        grid_spec=pltpu.PrefetchScalarGridSpec(
            num_scalar_prefetch=0,
            grid=(n_d, n_b),
            in_specs=[
                pl.BlockSpec((tb, H), lambda j, b: (b, 0)),   # x tail-mean
                pl.BlockSpec((1, H),  lambda j, b: (0, 0)),   # theta
                pl.BlockSpec((H, td), lambda j, b: (0, j)),   # W
                pl.BlockSpec((1, td), lambda j, b: (0, j)),   # bias
                pl.BlockSpec((tb, td), lambda j, b: (b, j)),  # y tail-mean
            ],
            out_specs=pl.BlockSpec((tb, td), lambda j, b: (b, j)),
        ),
        compiler_params=pltpu.CompilerParams(
            dimension_semantics=("parallel", "parallel"),
            vmem_limit_bytes=int(vmem_limit)),
    )(x_mean, theta2, w_s, bias2, y_mean)
    return out


if __name__ == "__main__":
    # Small shapes consistent with the module's forward: batch=2, seq=8,
    # hidden=32, out_dim=32.
    B, S, H, D = 2, 8, 32, 32
    key = jax.random.PRNGKey(0)
    k_x, k_y, k_t, k_w, k_b = jax.random.split(key, 5)

    x = jax.random.normal(k_x, (B, S, H), dtype=jnp.float32)
    y = jax.random.normal(k_y, (B, S, D), dtype=jnp.float32)
    theta = jax.random.normal(k_t, (H,), dtype=jnp.float32) * 0.1

    # Deterministic synthetic sliced_model parameters (linear layer H -> D).
    w = jax.random.normal(k_w, (H, D), dtype=jnp.float32) / jnp.sqrt(H)
    bias = jax.random.normal(k_b, (D,), dtype=jnp.float32) * 0.01

    # Pure-JAX reference of the module forward (unfused form).
    ref = jnp.mean(
        ((x + theta[None, None, :]) @ w + bias[None, None, :] - y)
        [:, -NUM_TARGET:, :],
        axis=1)

    # Exact-semantics check: f32 weights, tight tolerance.
    out_f32 = jax.block_until_ready(
        delta_activations(theta, x, y, w, bias, weight_dtype=None))
    assert out_f32.shape == (B, D)
    assert jnp.allclose(out_f32, ref, atol=1e-5, rtol=1e-5), "f32 mismatch"

    # Default performance path: bf16-streamed weights, f32 accumulation
    # (looser tolerance due to bf16 rounding of the matmul operands).
    out = jax.block_until_ready(delta_activations(theta, x, y, w, bias))
    assert out.shape == (B, D)
    assert jnp.allclose(out, ref, atol=5e-2, rtol=5e-2), "bf16 mismatch"

    print("KERNEL_OK")
</pallas_src>

<mosaic_0001>
module attributes {stable_mosaic.version = 11 : i64} {
  func.func @_delta_act_kernel(%arg0: i32, %arg1: i32, %arg2: memref<2x32xf32, #tpu.memory_space<vmem>>, %arg3: memref<1x32xf32, #tpu.memory_space<vmem>>, %arg4: memref<32x32xf32, #tpu.memory_space<vmem>>, %arg5: memref<1x32xf32, #tpu.memory_space<vmem>>, %arg6: memref<2x32xf32, #tpu.memory_space<vmem>>, %arg7: memref<2x32xf32, #tpu.memory_space<vmem>>) attributes {dimension_semantics = [#tpu.dimension_semantics<parallel>, #tpu.dimension_semantics<parallel>], iteration_bounds = array<i64: 1, 1>, scalar_prefetch = 0 : i64, scratch_operands = 0 : i64, tpu.core_type = #tpu.core_type<tc>, window_params = [{transform_indices = @transform_0, window_bounds = array<i64: 2, 32>}, {pipeline_mode = #tpu.pipeline_mode<synchronous>, transform_indices = @transform_1, window_bounds = array<i64: 1, 32>}, {transform_indices = @transform_2, window_bounds = array<i64: 32, 32>}, {transform_indices = @transform_3, window_bounds = array<i64: 1, 32>}, {transform_indices = @transform_4, window_bounds = array<i64: 2, 32>}, {transform_indices = @transform_5, window_bounds = array<i64: 2, 32>}]} {
    %c0 = arith.constant 0 : index
    %c0_0 = arith.constant 0 : index
    %0 = vector.load %arg2[%c0, %c0_0] : memref<2x32xf32, #tpu.memory_space<vmem>>, vector<2x32xf32>
    %c0_1 = arith.constant 0 : index
    %c0_2 = arith.constant 0 : index
    %1 = vector.load %arg3[%c0_1, %c0_2] : memref<1x32xf32, #tpu.memory_space<vmem>>, vector<1x32xf32>
    %2 = vector.broadcast %1 : vector<1x32xf32> to vector<2x32xf32>
    %3 = arith.addf %0, %2 : vector<2x32xf32>
    %c0_3 = arith.constant 0 : index
    %c0_4 = arith.constant 0 : index
    %4 = vector.load %arg4[%c0_3, %c0_4] : memref<32x32xf32, #tpu.memory_space<vmem>>, vector<32x32xf32>
    %cst = arith.constant dense<0.000000e+00> : vector<2x32xf32>
    %5 = tpu.matmul %3, %4, %cst {dimension_numbers = #tpu.dot_dimension_numbers<[1], [0], [0], [1], [0, 0, 1, 1], [], []>} : vector<2x32xf32>, vector<32x32xf32>, vector<2x32xf32> -> vector<2x32xf32>
    %c0_5 = arith.constant 0 : index
    %c0_6 = arith.constant 0 : index
    %6 = vector.load %arg5[%c0_5, %c0_6] : memref<1x32xf32, #tpu.memory_space<vmem>>, vector<1x32xf32>
    %7 = vector.broadcast %6 : vector<1x32xf32> to vector<2x32xf32>
    %8 = arith.addf %5, %7 : vector<2x32xf32>
    %c0_7 = arith.constant 0 : index
    %c0_8 = arith.constant 0 : index
    %9 = vector.load %arg6[%c0_7, %c0_8] : memref<2x32xf32, #tpu.memory_space<vmem>>, vector<2x32xf32>
    %10 = arith.subf %8, %9 : vector<2x32xf32>
    %c0_9 = arith.constant 0 : index
    %c0_10 = arith.constant 0 : index
    %11 = vector.load %arg7[%c0_9, %c0_10] : memref<2x32xf32, #tpu.memory_space<vmem>>, vector<2x32xf32>
    tpu.vector_store %arg7[%c0_9, %c0_10], %10 {strides = array<i32>} : memref<2x32xf32, #tpu.memory_space<vmem>>, vector<2x32xf32>,
    return
  }
  func.func @transform_0(%arg0: i32, %arg1: i32) -> (i32, i32) {
    %c0_i32 = arith.constant 0 : i32
    %c0_i32_0 = arith.constant 0 : i32
    return %arg1, %c0_i32 : i32, i32
  }
  func.func @transform_1(%arg0: i32, %arg1: i32) -> (i32, i32) {
    %c0_i32 = arith.constant 0 : i32
    %c0_i32_0 = arith.constant 0 : i32
    %c0_i32_1 = arith.constant 0 : i32
    return %c0_i32, %c0_i32_0 : i32, i32
  }
  func.func @transform_2(%arg0: i32, %arg1: i32) -> (i32, i32) {
    %c0_i32 = arith.constant 0 : i32
    %c0_i32_0 = arith.constant 0 : i32
    return %c0_i32, %arg0 : i32, i32
  }
  func.func @transform_3(%arg0: i32, %arg1: i32) -> (i32, i32) {
    %c0_i32 = arith.constant 0 : i32
    %c0_i32_0 = arith.constant 0 : i32
    return %c0_i32, %arg0 : i32, i32
  }
  func.func @transform_4(%arg0: i32, %arg1: i32) -> (i32, i32) {
    %c0_i32 = arith.constant 0 : i32
    return %arg1, %arg0 : i32, i32
  }
  func.func @transform_5(%arg0: i32, %arg1: i32) -> (i32, i32) {
    %c0_i32 = arith.constant 0 : i32
    return %arg1, %arg0 : i32, i32
  }
}

</mosaic_0001>

<llo_original>
// kernel: tpu_custom_call.1
$region0: #{tpu_custom_call.1}
  #allocation0 [shape = 'u32[]', space=smem, size = 0x4, offset = 0x4, fixed_abs, tag = 'smem constant byte address 0x4 - core index']
  #allocation1 [shape = 'u32[144,128]{1,0:T(1,128)}', space=vmem, size = 0x12000, scoped, tag = 'internal scratch']
  %s0 = inlined_call_operand.hbm [shape: f32[2,32], index: 0, kind: input, shape index: {}]
  %s1 = inlined_call_operand.vmem [shape: f32[1,32], index: 1, kind: input, shape index: {}]
  %s2 = inlined_call_operand.hbm [shape: f32[32,32], index: 2, kind: input, shape index: {}]
  %s3 = inlined_call_operand.vmem [shape: f32[1,32], index: 3, kind: input, shape index: {}]
  %s4 = inlined_call_operand.vmem [shape: f32[2,32], index: 4, kind: input, shape index: {}]
  %s5 = inlined_call_operand.hbm [shape: f32[2,32], index: 5, kind: output, shape index: {}]
  %s6 = sld [smem:[#allocation0]]
  $region38: #{tpu_custom_call.1} parent=0
    _
  %s8 = ssub.s32 1, %s6
  %s9 = scalar_select 0, %s8, %s6
  $region1: #{tpu_custom_call.1} parent=0
    #allocation2 [shape = 'u8[1024]{0}', space=vmem, size = 0x400, scoped, tag = 'input window, operand 0, single buffered']
    #allocation3 [shape = 's32[1]{0}', space=sflag, size = 0x4, scoped, tag = 'scoped memory for tpu_custom_call.1']
    #allocation4 [shape = 's32[1]{0}', space=sflag, size = 0x4, scoped, tag = 'scoped memory for tpu_custom_call.1']
    #allocation5 [shape = 'u8[16384]{0}', space=vmem, size = 0x4000, scoped, tag = 'input window, operand 2, single buffered']
    #allocation6 [shape = 's32[1]{0}', space=sflag, size = 0x4, scoped, tag = 'scoped memory for tpu_custom_call.1']
    #allocation7 [shape = 'u8[1024]{0}', space=vmem, size = 0x400, scoped, tag = 'output window, operand 0, single buffered']
    %10 = vsyncpa [#allocation3], 0
    %11 = vsyncpa [#allocation6], 0
    %12 = vsyncpa [#allocation4], 0
    // Predicated region
    $region2: #{tpu_custom_call.1} parent=1 // pred_check
      _
    $region3: #{tpu_custom_call.1} parent=1 // pred_check_branch
      %14 = sbr.rel (0) target = $region5
    $region4: #{tpu_custom_call.1} parent=1 // pred_region
      %s16 = ssub.s32 32, 32
      %17 = vsyncadd [#allocation3], %s16
      %s19 = sshll.u32 [#allocation2], 4
      %s20 = int_to_ptr.vmem [resolvable:$true] %s19
      %22 = dma.hbm_to_vmem [thread:$0]  %s0, 32, %s20, [#allocation3]
    $region5: #{tpu_custom_call.1} parent=1 // pred_fallthru
      _
    // Predicated region
    $region6: #{tpu_custom_call.1} parent=1 // pred_check
      _
    $region7: #{tpu_custom_call.1} parent=1 // pred_check_branch
      %24 = sbr.rel (0) target = $region9
    $region8: #{tpu_custom_call.1} parent=1 // pred_region
      _
    $region9: #{tpu_custom_call.1} parent=1 // pred_fallthru
      _
    // Predicated region
    $region10: #{tpu_custom_call.1} parent=1 // pred_check
      _
    $region11: #{tpu_custom_call.1} parent=1 // pred_check_branch
      %26 = sbr.rel (0) target = $region13
    $region12: #{tpu_custom_call.1} parent=1 // pred_region
      %s28 = ssub.s32 512, 512
      %29 = vsyncadd [#allocation6], %s28
      %s30 = sshll.u32 [#allocation5], 4
      %s31 = int_to_ptr.vmem [resolvable:$true] %s30
      %36 = dma.hbm_to_vmem [thread:$0]  %s2, 512, %s31, [#allocation6], 128, 128, 8
    $region13: #{tpu_custom_call.1} parent=1 // pred_fallthru
      _
    // Predicated region
    $region14: #{tpu_custom_call.1} parent=1 // pred_check
      _
    $region15: #{tpu_custom_call.1} parent=1 // pred_check_branch
      %38 = sbr.rel (0) target = $region17
    $region16: #{tpu_custom_call.1} parent=1 // pred_region
      _
    $region17: #{tpu_custom_call.1} parent=1 // pred_fallthru
      _
    // Predicated region
    $region18: #{tpu_custom_call.1} parent=1 // pred_check
      _
    $region19: #{tpu_custom_call.1} parent=1 // pred_check_branch
      %40 = sbr.rel (0) target = $region21
    $region20: #{tpu_custom_call.1} parent=1 // pred_region
      _
    $region21: #{tpu_custom_call.1} parent=1 // pred_fallthru
      _
    // Predicated region
    $region22: #{tpu_custom_call.1} parent=1 // pred_check
      _
    $region23: #{tpu_custom_call.1} parent=1 // pred_check_branch
      %42 = sbr.rel (0) target = $region25
    $region24: #{tpu_custom_call.1} parent=1 // pred_region
      %43 = dma.done [#allocation3], 32
    $region25: #{tpu_custom_call.1} parent=1 // pred_fallthru
      _
    // Predicated region
    $region26: #{tpu_custom_call.1} parent=1 // pred_check
      _
    $region27: #{tpu_custom_call.1} parent=1 // pred_check_branch
      %45 = sbr.rel (0) target = $region29
    $region28: #{tpu_custom_call.1} parent=1 // pred_region
      %46 = dma.done [#allocation6], 512
    $region29: #{tpu_custom_call.1} parent=1 // pred_fallthru
      _
    %v47 = vld [vmem:[#allocation2] sm:$0x3]
    %v48 = vld [vmem:[%s1] sm:$0x1]
    %v50 = vlaneseq
    %v51 = vshrl.u32 %v50, 7
    %v52 = vsub.s32 0, %v51
    %v53 = vrot.slane %v48, %v52
    %v55 = vadd.f32 %v47, %v53
    %v56 = vld [vmem:[#allocation5] sm:$0xff]
    %v57 = vld [vmem:[#allocation5 + $0x8] sm:$0xff]
    %v58 = vld [vmem:[#allocation5 + $0x10] sm:$0xff]
    %v59 = vld [vmem:[#allocation5 + $0x18] sm:$0xff]
    %v60 = vld [vmem:[%s3] sm:$0x1]
    %v62 = vlaneseq
    %v63 = vshrl.u32 %v62, 7
    %v64 = vsub.s32 0, %v63
    %v65 = vrot.slane %v60, %v64
    %vm67 = vcmask 261120
    %v69 = vsel %vm67, %v55, 0
    %71 = vmatprep.subr.mxu0 0.0
    %72 = vmatpush1.msra.mxu0 %v56
    %73 = vmatprep.subr.mxu0 0.0
    %74 = vmatpush1.msra.mxu0 %v57
    %75 = vmatprep.subr.mxu0 0.0
    %76 = vmatpush1.msra.mxu0 %v58
    %77 = vmatprep.subr.mxu0 0.0
    %78 = vmatpush1.msra.mxu0 %v59
    %79 = vmatprep.subr.mxu0 0.0
    %80 = vmatpush1.msra.mxu0 0.0
    %81 = vmatprep.subr.mxu0 0.0
    %82 = vmatpush1.msra.mxu0 0.0
    %83 = vmatprep.subr.mxu0 0.0
    %84 = vmatpush1.msra.mxu0 0.0
    %85 = vmatprep.subr.mxu0 0.0
    %86 = vmatpush1.msra.mxu0 0.0
    %87 = vmatprep.subr.mxu0 0.0
    %88 = vmatpush1.msra.mxu0 0.0
    %89 = vmatprep.subr.mxu0 0.0
    %90 = vmatpush1.msra.mxu0 0.0
    %91 = vmatprep.subr.mxu0 0.0
    %92 = vmatpush1.msra.mxu0 0.0
    %93 = vmatprep.subr.mxu0 0.0
    %94 = vmatpush1.msra.mxu0 0.0
    %95 = vmatprep.subr.mxu0 0.0
    %96 = vmatpush1.msra.mxu0 0.0
    %97 = vmatprep.subr.mxu0 0.0
    %98 = vmatpush1.msra.mxu0 0.0
    %99 = vmatprep.subr.mxu0 0.0
    %100 = vmatpush1.msra.mxu0 0.0
    %101 = vmatprep.subr.mxu0 0.0
    %102 = vmatpush1.msra.mxu0 0.0
    %103 = vmatprep.subr.mxu0 0.0
    %104 = vmatpush1.msra.mxu0 0.0
    %105 = vmatprep.subr.mxu0 0.0
    %106 = vmatpush1.msra.mxu0 0.0
    %107 = vmatprep.subr.mxu0 0.0
    %108 = vmatpush1.msra.mxu0 0.0
    %109 = vmatprep.subr.mxu0 0.0
    %110 = vmatpush1.msra.mxu0 0.0
    %111 = vmatprep.subr.mxu0 0.0
    %112 = vmatpush1.msra.mxu0 0.0
    %113 = vmatprep.subr.mxu0 0.0
    %114 = vmatpush1.msra.mxu0 0.0
    %115 = vmatprep.subr.mxu0 0.0
    %116 = vmatpush1.msra.mxu0 0.0
    %117 = vmatprep.subr.mxu0 0.0
    %118 = vmatpush1.msra.mxu0 0.0
    %119 = vmatprep.subr.mxu0 0.0
    %120 = vmatpush1.msra.mxu0 0.0
    %121 = vmatprep.subr.mxu0 0.0
    %122 = vmatpush1.msra.mxu0 0.0
    %123 = vmatprep.subr.mxu0 0.0
    %124 = vmatpush1.msra.mxu0 0.0
    %125 = vmatprep.subr.mxu0 0.0
    %126 = vmatpush1.msra.mxu0 0.0
    %127 = vmatprep.subr.mxu0 0.0
    %128 = vmatpush1.msra.mxu0 0.0
    %129 = vmatprep.subr.mxu0 0.0
    %130 = vmatpush1.msra.mxu0 0.0
    %131 = vmatprep.subr.mxu0 0.0
    %132 = vmatpush1.msra.mxu0 0.0
    %133 = vmatprep.subr.mxu0 0.0
    %134 = vmatpush1.msra.mxu0 0.0
    %135 = vmatprep.mubr.f32.mxu0 0.0
    %136 = vmatmul.mubr.f32.gmra.mrb[0].mxu0 %v69
    %v137 = vpop.f32.mrb[0].mxu0
    %v138 = vadd.f32 %v65, %v137
    %v139 = vpop.f32.mrb[0].mxu0
    %140 = vdwg.mxu0
    %v141 = vld [vmem:[%s4] sm:$0x3]
    %v142 = vsub.f32 %v138, %v141
    %vm143 = vcmask 254976
    %144 = vst.msk [vmem:[#allocation7] sm:$0x3] %vm143, %v142
    // Predicated region
    $region30: #{tpu_custom_call.1} parent=1 // pred_check
      _
    $region31: #{tpu_custom_call.1} parent=1 // pred_check_branch
      %146 = sbr.rel (0) target = $region33
    $region32: #{tpu_custom_call.1} parent=1 // pred_region
      %s148 = ssub.s32 32, 32
      %149 = vsyncadd [#allocation4], %s148
      %s151 = sshll.u32 [#allocation7], 4
      %s152 = int_to_ptr.vmem [resolvable:$true] %s151
      %154 = dma.vmem_to_hbm [thread:$0]  %s152, 32, %s5, [#allocation4]
    $region33: #{tpu_custom_call.1} parent=1 // pred_fallthru
      _
    // Predicated region
    $region34: #{tpu_custom_call.1} parent=1 // pred_check
      _
    $region35: #{tpu_custom_call.1} parent=1 // pred_check_branch
      %156 = sbr.rel (0) target = $region37
    $region36: #{tpu_custom_call.1} parent=1 // pred_region
      %157 = dma.done [#allocation4], 32
    $region37: #{tpu_custom_call.1} parent=1 // pred_fallthru
      _
    %158 = vsyncpa [#allocation3], 1
    %159 = vsyncpa [#allocation6], 1
    %160 = vsyncpa [#allocation4], 1

</llo_original>
